<compile_context>
chip_gen: v7x
topology: tpu7x:2x2x1
jax: 0.10.0
libtpu: 0.0.40
codegen_flags: <defaults>
</compile_context>

<pallas_src>
import numpy as np

import jax
import jax.numpy as jnp
from jax.experimental import pallas as pl
from jax.experimental.pallas import tpu as pltpu

LANE = 128     # TPU vreg lane width
SUBLANE = 8    # f32 vreg sublane count

# Fixed bounds from the PyTorch module (requires_grad=False buffers).
LOW = np.array(
    [0, 0, 0, 0, 0, 0, 0, 0.9, 0.9, 0.9, 0, 0, 0, 0, 0, 0, 0, 0],
    np.float32,
)
UP = np.array(
    [10, 10, 10, 10, 2, 0.02, 0.1, 1, 1, 1, 0.02, 0.02, 0.02, 0.02,
     0.002, 0.02, 0.02, 0.01],
    np.float32,
)


def parameter_kernel(packed_ref, o_ref):
    # packed rows: 0 = para, 1 = low, 2 = scale (= up - low), 3..7 = zeros.
    para = packed_ref[0:1, :]     # (1, 128)
    low = packed_ref[1:2, :]      # (1, 128)
    scale = packed_ref[2:3, :]    # (1, 128)
    # sigmoid runs on the EUP, the mul/add on the VPU.
    row = low + scale * jax.nn.sigmoid(para)          # (1, 128)
    # Broadcast to the full (8, 128) tile -> single unmasked full-vreg store.
    o_ref[...] = jnp.broadcast_to(row, o_ref.shape)


class ParameterModule:
    """Pallas equivalent of the PyTorch `Parameter` module's forward pass."""

    def __init__(self, parameter_dim=18, low=LOW, up=UP):
        self.n = parameter_dim
        pad = (-parameter_dim) % LANE
        self.padded_n = parameter_dim + pad

        # Static bound rows, built once (hoisted out of the per-call path):
        #   row 0 -> low,  row 1 -> scale = up - low,  rows 2..6 -> zeros.
        const = np.zeros((SUBLANE - 1, self.padded_n), np.float32)
        const[0, :parameter_dim] = low
        const[1, :parameter_dim] = up - low
        self._const_rows = jnp.asarray(const)          # (7, padded_n), constant

        self._forward_jit = jax.jit(self._forward)

    def _forward(self, para):
        # Per-call: only the para row needs packing; the rest is a constant.
        para_row = jnp.zeros((1, self.padded_n), jnp.float32)
        para_row = para_row.at[0, : self.n].set(para.astype(jnp.float32))
        packed = jnp.concatenate([para_row, self._const_rows], axis=0)  # (8, padded_n)

        vmem = pl.BlockSpec(memory_space=pltpu.MemorySpace.VMEM)
        out = pl.pallas_call(
            parameter_kernel,
            out_shape=jax.ShapeDtypeStruct((SUBLANE, self.padded_n), jnp.float32),
            in_specs=[vmem],
            out_specs=vmem,
        )(packed)
        return out[0, : self.n]

    def __call__(self, para):
        return self._forward_jit(para)


def reference_forward(para, low, up):
    """Pure-JAX reference matching the PyTorch module exactly."""
    return low + (up - low) * jax.nn.sigmoid(para)


if __name__ == "__main__":
    key = jax.random.PRNGKey(0)
    parameter_dim = 18

    # torch.rand(parameter_dim) equivalent: U[0, 1)
    para = jax.random.uniform(key, (parameter_dim,), jnp.float32)

    module = ParameterModule(parameter_dim)
    out = jax.block_until_ready(module(para))

    ref = reference_forward(para, jnp.asarray(LOW), jnp.asarray(UP))
    assert out.shape == (parameter_dim,)
    assert jnp.allclose(out, ref, atol=1e-6, rtol=1e-6), "mismatch vs reference"

    print("KERNEL_OK")
</pallas_src>

<mosaic_0001>
module attributes {stable_mosaic.version = 11 : i64} {
  func.func @parameter_kernel(%arg0: memref<8x128xf32, #tpu.memory_space<vmem>>, %arg1: memref<8x128xf32, #tpu.memory_space<vmem>>) attributes {dimension_semantics = [], scalar_prefetch = 0 : i64, scratch_operands = 0 : i64, tpu.core_type = #tpu.core_type<tc>} {
    %c0 = arith.constant 0 : index
    %c0_0 = arith.constant 0 : index
    %0 = vector.load %arg0[%c0, %c0_0] : memref<8x128xf32, #tpu.memory_space<vmem>>, vector<1x128xf32>
    %c1 = arith.constant 1 : index
    %c0_1 = arith.constant 0 : index
    %1 = vector.load %arg0[%c1, %c0_1] : memref<8x128xf32, #tpu.memory_space<vmem>>, vector<1x128xf32>
    %c2 = arith.constant 2 : index
    %c0_2 = arith.constant 0 : index
    %2 = vector.load %arg0[%c2, %c0_2] : memref<8x128xf32, #tpu.memory_space<vmem>>, vector<1x128xf32>
    %3 = arith.negf %0 : vector<1x128xf32>
    %4 = math.exp %3 : vector<1x128xf32>
    %cst = arith.constant 1.000000e+00 : f32
    %5 = vector.broadcast %cst : f32 to vector<1x128xf32>
    %6 = arith.addf %5, %4 : vector<1x128xf32>
    %7 = arith.divf %5, %6 : vector<1x128xf32>
    %8 = arith.mulf %2, %7 : vector<1x128xf32>
    %9 = arith.addf %1, %8 : vector<1x128xf32>
    %10 = vector.shape_cast %9 : vector<1x128xf32> to vector<1x128xf32>
    %11 = vector.broadcast %10 : vector<1x128xf32> to vector<8x128xf32>
    %c0_3 = arith.constant 0 : index
    %c0_4 = arith.constant 0 : index
    %12 = vector.load %arg1[%c0_3, %c0_4] : memref<8x128xf32, #tpu.memory_space<vmem>>, vector<8x128xf32>
    tpu.vector_store %arg1[%c0_3, %c0_4], %11 {strides = array<i32>} : memref<8x128xf32, #tpu.memory_space<vmem>>, vector<8x128xf32>,
    return
  }
}

</mosaic_0001>

<llo_original>
// kernel: _forward.1
$region0: #{_forward.1}
  #allocation0 [shape = 'u32[]', space=smem, size = 0x4, offset = 0x4, fixed_abs, tag = 'smem constant byte address 0x4 - core index']
  #allocation1 [shape = 'u32[144,128]{1,0:T(1,128)}', space=vmem, size = 0x12000, scoped, tag = 'internal scratch']
  %s0 = inlined_call_operand.vmem [shape: f32[8,128], index: 0, kind: input, shape index: {}]
  %s1 = inlined_call_operand.vmem [shape: f32[8,128], index: 1, kind: output, shape index: {}]
  %s2 = sld [smem:[#allocation0]]
  $region14: #{_forward.1} parent=0
    _
  %s4 = ssub.s32 1, %s2
  %s5 = scalar_select 0, %s4, %s2
  // Predicated region
  $region2: #{_forward.1} parent=0 // pred_check
    _
  $region3: #{_forward.1} parent=0 // pred_check_branch
    %7 = sbr.rel (0) target = $region5
  $region4: #{_forward.1} parent=0 // pred_region
    _
  $region5: #{_forward.1} parent=0 // pred_fallthru
    _
  %v8 = vld [vmem:[%s0] sm:$0x1]
  %v9 = vld [vmem:[%s0 + $0x1] sm:$0x1]
  %v10 = vld [vmem:[%s0 + $0x2] sm:$0x1]
  %v11 = vxor.u32 %v8, 2147483648
  %v12 = vmul.f32 %v11, 1.442695
  %v13 = vpow.pop %v12
  %v14 = vadd.f32 %v13, 1.0
  %v15 = vrcp.pop %v14
  %v16 = vmul.f32 1.0, %v15
  %v17 = vmul.f32 %v10, %v16
  %v18 = vadd.f32 %v9, %v17
  %v19 = vlaneseq
  %v20 = vshrl.u32 %v19, 7
  %v21 = vsub.s32 0, %v20
  %v22 = vrot.slane %v18, %v21
  %23 = vst [vmem:[%s1] sm:$0xff] %v22
  // Predicated region
  $region6: #{_forward.1} parent=0 // pred_check
    _
  $region7: #{_forward.1} parent=0 // pred_check_branch
    %25 = sbr.rel (0) target = $region9
  $region8: #{_forward.1} parent=0 // pred_region
    _
  $region9: #{_forward.1} parent=0 // pred_fallthru
    _
  // Predicated region
  $region10: #{_forward.1} parent=0 // pred_check
    _
  $region11: #{_forward.1} parent=0 // pred_check_branch
    %27 = sbr.rel (0) target = $region13
  $region12: #{_forward.1} parent=0 // pred_region
    _
  $region13: #{_forward.1} parent=0 // pred_fallthru
    _

</llo_original>
